<compile_context>
chip_gen: v7x
topology: tpu7x:2x2x1
jax: 0.10.0
libtpu: 0.0.40
codegen_flags: <defaults>
</compile_context>

<pallas_src>
import functools

import jax
import jax.numpy as jnp
from jax import lax
from jax.experimental import pallas as pl
from jax.experimental.pallas import tpu as pltpu


def _round_up(x, m):
    return (x + m - 1) // m * m


# --------------------------------------------------------------------------- #
# Kernel: GRU recurrence + max/mean pooling + final fc, gridded (batch, time). #
# --------------------------------------------------------------------------- #
def _gru_pool_fc_kernel(x_ref, wih_ref, bih_ref, whh_ref, bhh_ref,
                        wfcmax_ref, wfcmean_ref, bfc_ref,
                        out_ref,
                        gi_scr, h_scr, mx_scr, sm_scr,
                        *, seq_len):
    # x_ref    : (T_blk, B_blk, D)  bf16 time-major embedded activations
    # wih_ref  : (D, 3*Hp) bf16 ; bih_ref : (1, 3*Hp) f32
    # whh_ref  : (Hp, 3*Hp) f32 ; bhh_ref : (1, 3*Hp) f32      gate order [r, z, n]
    # wfcmax_ref / wfcmean_ref : (Hp, Cp) f32 ; bfc_ref : (1, Cp) f32
    # out_ref  : (B_blk, Cp) f32
    T_blk, B_blk, D = x_ref.shape
    Hp = whh_ref.shape[0]
    H3 = whh_ref.shape[1]            # 3 * Hp

    ti = pl.program_id(1)            # time-tile index (grid = (batch, time))

    # ---- init carries at the first time tile of each batch tile -------------
    @pl.when(ti == 0)
    def _init():
        h_scr[...] = jnp.zeros_like(h_scr)
        mx_scr[...] = jnp.full(mx_scr.shape, jnp.finfo(jnp.float32).min,
                               dtype=jnp.float32)
        sm_scr[...] = jnp.zeros_like(sm_scr)

    # ---- input projection for the whole time tile: one big MXU matmul -------
    # (replaces T tiny per-step (B, D) x (D, 3H) matmuls; b_ih folded in once)
    x_tile = x_ref[...].reshape(T_blk * B_blk, D)                    # bf16
    gi = jnp.dot(x_tile, wih_ref[...],
                 preferred_element_type=jnp.float32) + bih_ref[...]  # f32
    gi_scr[...] = gi.reshape(T_blk, B_blk, H3)

    # hoist the recurrent-bias broadcast out of the time loop
    bhh = jnp.broadcast_to(bhh_ref[...], (B_blk, H3))

    base_t = ti * T_blk

    def step(t, carry):
        h, mx, sm = carry
        git = gi_scr[t]                                              # (B_blk, 3Hp)
        gh = jnp.dot(h, whh_ref[...],
                     preferred_element_type=jnp.float32) + bhh
        # gate slices are lane-aligned (Hp is a multiple of 128); order [r, z, n]
        i_r = git[:, 0:Hp]
        i_z = git[:, Hp:2 * Hp]
        i_n = git[:, 2 * Hp:3 * Hp]
        h_r = gh[:, 0:Hp]
        h_z = gh[:, Hp:2 * Hp]
        h_n = gh[:, 2 * Hp:3 * Hp]
        r = jax.nn.sigmoid(i_r + h_r)
        z = jax.nn.sigmoid(i_z + h_z)
        n = jnp.tanh(i_n + r * h_n)
        h_new = (1.0 - z) * n + z * h
        # keep padded timesteps (t >= seq_len) out of the pooling
        valid = (base_t + t) < seq_len
        mx = jnp.where(valid, jnp.maximum(mx, h_new), mx)
        sm = jnp.where(valid, sm + h_new, sm)
        return h_new, mx, sm

    h, mx, sm = lax.fori_loop(0, T_blk, step,
                              (h_scr[...], mx_scr[...], sm_scr[...]))
    h_scr[...] = h
    mx_scr[...] = mx
    sm_scr[...] = sm

    # ---- finalize: pooled fc, split to avoid a lane-dim concatenate ---------
    @pl.when(ti == pl.num_programs(1) - 1)
    def _finalize():
        mean = sm * (1.0 / seq_len)
        logits = (jnp.dot(mx, wfcmax_ref[...],
                          preferred_element_type=jnp.float32)
                  + jnp.dot(mean, wfcmean_ref[...],
                            preferred_element_type=jnp.float32)
                  + bfc_ref[...])
        out_ref[...] = logits.astype(out_ref.dtype)


# --------------------------------------------------------------------------- #
# Parameter packing: PyTorch layouts -> padded, right-multiply, per-gate-       #
# lane-aligned layouts consumed by the kernel.                                  #
# --------------------------------------------------------------------------- #
def _pack_params(params, Hp, Cp):
    H = params["w_hh"].shape[1]           # torch weight_hh_l0: (3H, H)
    C = params["fc_w"].shape[0]           # torch fc weight:    (C, 2H)

    def pad_gate_cols(w_t):
        # w_t: (rows, 3H)  ->  (rows, 3*Hp), each gate block padded to Hp lanes.
        rows = w_t.shape[0]
        out = jnp.zeros((rows, 3 * Hp), jnp.float32)
        for g in range(3):
            out = out.at[:, g * Hp:g * Hp + H].set(w_t[:, g * H:(g + 1) * H])
        return out

    w_ih_t = params["w_ih"].T.astype(jnp.float32)     # (D, 3H)
    w_hh_t = params["w_hh"].T.astype(jnp.float32)     # (H, 3H)

    w_ih_p = pad_gate_cols(w_ih_t)                                   # (D, 3Hp)
    w_hh_p = jnp.zeros((Hp, 3 * Hp), jnp.float32)
    w_hh_p = w_hh_p.at[:H, :].set(pad_gate_cols(w_hh_t))             # (Hp, 3Hp)

    b_ih_p = pad_gate_cols(params["b_ih"].reshape(1, 3 * H).astype(jnp.float32))
    b_hh_p = pad_gate_cols(params["b_hh"].reshape(1, 3 * H).astype(jnp.float32))

    fc_w_t = params["fc_w"].T.astype(jnp.float32)                    # (2H, C)
    fc_max = jnp.zeros((Hp, Cp), jnp.float32).at[:H, :C].set(fc_w_t[:H])
    fc_mean = jnp.zeros((Hp, Cp), jnp.float32).at[:H, :C].set(fc_w_t[H:])
    fc_b = jnp.zeros((1, Cp), jnp.float32).at[0, :C].set(
        params["fc_b"].astype(jnp.float32))

    return dict(
        w_ih=w_ih_p.astype(jnp.bfloat16),     # bf16 MXU path for the big matmul
        b_ih=b_ih_p, w_hh=w_hh_p, b_hh=b_hh_p,
        fc_w_max=fc_max, fc_w_mean=fc_mean, fc_b=fc_b,
    )


# --------------------------------------------------------------------------- #
# Forward wrapper.                                                              #
# --------------------------------------------------------------------------- #
def news_gru_word2vec_forward(tokens, lengths, params):
    """tokens: (B, T) int32, lengths: (B,) int32 (unused by the reference output)."""
    del lengths  # "one = out[:, b-1, :]" is dead code in the PyTorch forward
    B, T = tokens.shape
    emb = params["embedding"]
    D = emb.shape[1]
    H = params["w_hh"].shape[1]
    C = params["fc_w"].shape[0]

    # --- padded / tiled geometry ---------------------------------------------
    Hp = _round_up(H, 128)                       # lane-aligned gates
    Cp = _round_up(C, 128)                       # lane-dense output stores
    B_blk = min(_round_up(B, 16), 128)           # sublane-aligned (bf16) batch tile
    nb = pl.cdiv(B, B_blk)
    B_pad = nb * B_blk

    # size the time tile so the GI scratch stays ~<= 4 MiB (v7x-safe)
    gi_row_bytes = B_blk * 3 * Hp * 4
    t_cap = max(8, (4 * 1024 * 1024) // gi_row_bytes)
    T_blk = int(min(T, 128, t_cap))
    nt = pl.cdiv(T, T_blk)
    T_pad = nt * T_blk

    packed = _pack_params(params, Hp, Cp)

    # --- embedding lookup (glue), time-major, bf16 ----------------------------
    # TODO(synk): fuse the embedding gather into the kernel (scalar-prefetch token
    # ids + per-tile gather) to avoid materializing the (T, B, D) activation in HBM.
    tok_t = jnp.transpose(tokens).astype(jnp.int32)                  # (T, B)
    tok_t = jnp.pad(tok_t, ((0, T_pad - T), (0, B_pad - B)))
    x = jnp.take(emb.astype(jnp.bfloat16), tok_t, axis=0)            # (T_pad, B_pad, D)

    kernel = functools.partial(_gru_pool_fc_kernel, seq_len=T)

    # rough VMEM budget: x double-buffer + GI scratch + carries + resident weights
    est = (2 * 2 * T_blk * B_blk * D * 2
           + T_blk * B_blk * 3 * Hp * 4
           + 3 * B_blk * Hp * 4
           + 2 * (D * 3 * Hp * 2 + Hp * 3 * Hp * 4 + 2 * 3 * Hp * 4
                  + 2 * Hp * Cp * 4 + Cp * 4 + B_blk * Cp * 4))
    vmem_limit = int(min(max(2 * est, 16 * 1024 * 1024), 64 * 1024 * 1024))

    out = pl.pallas_call(
        kernel,
        out_shape=jax.ShapeDtypeStruct((B_pad, Cp), jnp.float32),
        grid_spec=pltpu.PrefetchScalarGridSpec(
            num_scalar_prefetch=0,
            grid=(nb, nt),
            in_specs=[
                pl.BlockSpec((T_blk, B_blk, D), lambda bi, ti: (ti, bi, 0)),  # x
                pl.BlockSpec((D, 3 * Hp), lambda bi, ti: (0, 0)),             # W_ih
                pl.BlockSpec((1, 3 * Hp), lambda bi, ti: (0, 0)),             # b_ih
                pl.BlockSpec((Hp, 3 * Hp), lambda bi, ti: (0, 0)),            # W_hh
                pl.BlockSpec((1, 3 * Hp), lambda bi, ti: (0, 0)),             # b_hh
                pl.BlockSpec((Hp, Cp), lambda bi, ti: (0, 0)),                # fc (max)
                pl.BlockSpec((Hp, Cp), lambda bi, ti: (0, 0)),                # fc (mean)
                pl.BlockSpec((1, Cp), lambda bi, ti: (0, 0)),                 # fc bias
            ],
            out_specs=pl.BlockSpec((B_blk, Cp), lambda bi, ti: (bi, 0)),
            scratch_shapes=[
                pltpu.VMEM((T_blk, B_blk, 3 * Hp), jnp.float32),  # GI tile
                pltpu.VMEM((B_blk, Hp), jnp.float32),             # h carry
                pltpu.VMEM((B_blk, Hp), jnp.float32),             # running max
                pltpu.VMEM((B_blk, Hp), jnp.float32),             # running sum
            ],
        ),
        compiler_params=pltpu.CompilerParams(
            dimension_semantics=("parallel", "arbitrary"),
            vmem_limit_bytes=vmem_limit,
        ),
    )(x,
      packed["w_ih"], packed["b_ih"], packed["w_hh"], packed["b_hh"],
      packed["fc_w_max"], packed["fc_w_mean"], packed["fc_b"])

    return out[:B, :C]


# --------------------------------------------------------------------------- #
# Parameters (PyTorch-native layouts) and a pure-JAX reference for checking.    #
# --------------------------------------------------------------------------- #
def init_params(key, vocab_size, input_size, hidden_size, num_classes):
    ks = jax.random.split(key, 7)
    s = 0.1
    H, D, C = hidden_size, input_size, num_classes
    return {
        "embedding": jax.random.normal(ks[0], (vocab_size, D), jnp.float32) * s,
        "w_ih": jax.random.normal(ks[1], (3 * H, D), jnp.float32) * s,  # weight_ih_l0
        "w_hh": jax.random.normal(ks[2], (3 * H, H), jnp.float32) * s,  # weight_hh_l0
        "b_ih": jax.random.normal(ks[3], (3 * H,), jnp.float32) * s,
        "b_hh": jax.random.normal(ks[4], (3 * H,), jnp.float32) * s,
        "fc_w": jax.random.normal(ks[5], (C, 2 * H), jnp.float32) * s,  # Linear(2H, C)
        "fc_b": jax.random.normal(ks[6], (C,), jnp.float32) * s,
    }


def _reference_forward(tokens, params):
    """Pure-JAX f32 replica of the PyTorch forward (for a sanity check)."""
    x = jnp.take(params["embedding"], tokens, axis=0)        # (B, T, D)
    H = params["w_hh"].shape[1]
    w_ih, w_hh = params["w_ih"], params["w_hh"]
    b_ih, b_hh = params["b_ih"], params["b_hh"]

    def cell(h, x_t):
        gi = x_t @ w_ih.T + b_ih
        gh = h @ w_hh.T + b_hh
        i_r, i_z, i_n = jnp.split(gi, 3, axis=-1)
        h_r, h_z, h_n = jnp.split(gh, 3, axis=-1)
        r = jax.nn.sigmoid(i_r + h_r)
        z = jax.nn.sigmoid(i_z + h_z)
        n = jnp.tanh(i_n + r * h_n)
        h_new = (1.0 - z) * n + z * h
        return h_new, h_new

    B = tokens.shape[0]
    h0 = jnp.zeros((B, H), jnp.float32)
    _, hs = lax.scan(cell, h0, jnp.transpose(x, (1, 0, 2)))   # (T, B, H)
    out = jnp.transpose(hs, (1, 0, 2))                        # (B, T, H)
    pooled = jnp.concatenate([out.max(axis=1), out.mean(axis=1)], axis=1)
    return pooled @ params["fc_w"].T + params["fc_b"]


if __name__ == "__main__":
    B, T = 2, 8            # batch, sequence length
    VOCAB = 50
    INPUT_SIZE = 16        # embedding dim / GRU input_size
    HIDDEN = 32
    NUM_CLASSES = 4

    key = jax.random.PRNGKey(0)
    kp, kt, kl = jax.random.split(key, 3)

    params = init_params(kp, VOCAB, INPUT_SIZE, HIDDEN, NUM_CLASSES)
    tokens = jax.random.randint(kt, (B, T), 0, VOCAB, dtype=jnp.int32)
    lengths = jax.random.randint(kl, (B,), 1, T + 1, dtype=jnp.int32)

    out = news_gru_word2vec_forward(tokens, lengths, params)
    jax.block_until_ready(out)
    assert out.shape == (B, NUM_CLASSES)

    ref = _reference_forward(tokens, params)
    assert jnp.allclose(out, ref, atol=1e-2, rtol=1e-2), (out, ref)

    print("KERNEL_OK")
</pallas_src>

<mosaic_0001>
module attributes {stable_mosaic.version = 11 : i64} {
  func.func @_gru_pool_fc_kernel(%arg0: i32, %arg1: i32, %arg2: memref<8x16x16xbf16, #tpu.memory_space<vmem>>, %arg3: memref<16x384xbf16, #tpu.memory_space<vmem>>, %arg4: memref<1x384xf32, #tpu.memory_space<vmem>>, %arg5: memref<128x384xf32, #tpu.memory_space<vmem>>, %arg6: memref<1x384xf32, #tpu.memory_space<vmem>>, %arg7: memref<128x128xf32, #tpu.memory_space<vmem>>, %arg8: memref<128x128xf32, #tpu.memory_space<vmem>>, %arg9: memref<1x128xf32, #tpu.memory_space<vmem>>, %arg10: memref<16x128xf32, #tpu.memory_space<vmem>>, %arg11: memref<8x16x384xf32, #tpu.memory_space<vmem>>, %arg12: memref<16x128xf32, #tpu.memory_space<vmem>>, %arg13: memref<16x128xf32, #tpu.memory_space<vmem>>, %arg14: memref<16x128xf32, #tpu.memory_space<vmem>>) attributes {dimension_semantics = [#tpu.dimension_semantics<parallel>, #tpu.dimension_semantics<arbitrary>], iteration_bounds = array<i64: 1, 1>, scalar_prefetch = 0 : i64, scratch_operands = 4 : i64, tpu.core_type = #tpu.core_type<tc>, window_params = [{transform_indices = @transform_0, window_bounds = array<i64: 8, 16, 16>}, {pipeline_mode = #tpu.pipeline_mode<synchronous>, transform_indices = @transform_1, window_bounds = array<i64: 16, 384>}, {pipeline_mode = #tpu.pipeline_mode<synchronous>, transform_indices = @transform_2, window_bounds = array<i64: 1, 384>}, {pipeline_mode = #tpu.pipeline_mode<synchronous>, transform_indices = @transform_3, window_bounds = array<i64: 128, 384>}, {pipeline_mode = #tpu.pipeline_mode<synchronous>, transform_indices = @transform_4, window_bounds = array<i64: 1, 384>}, {pipeline_mode = #tpu.pipeline_mode<synchronous>, transform_indices = @transform_5, window_bounds = array<i64: 128, 128>}, {pipeline_mode = #tpu.pipeline_mode<synchronous>, transform_indices = @transform_6, window_bounds = array<i64: 128, 128>}, {pipeline_mode = #tpu.pipeline_mode<synchronous>, transform_indices = @transform_7, window_bounds = array<i64: 1, 128>}, {transform_indices = @transform_8, window_bounds = array<i64: 16, 128>}]} {
    %c0_i32 = arith.constant 0 : i32
    %0 = arith.cmpi eq, %arg1, %c0_i32 : i32
    %1 = arith.extui %0 : i1 to i32
    %c0_i32_0 = arith.constant 0 : i32
    %2 = arith.cmpi ne, %1, %c0_i32_0 : i32
    scf.if %2 {
      %cst_29 = arith.constant 0.000000e+00 : f32
      %27 = vector.broadcast %cst_29 : f32 to vector<16x128xf32>
      %c0_30 = arith.constant 0 : index
      %c0_31 = arith.constant 0 : index
      %28 = vector.load %arg12[%c0_30, %c0_31] : memref<16x128xf32, #tpu.memory_space<vmem>>, vector<16x128xf32>
      tpu.vector_store %arg12[%c0_30, %c0_31], %27 {strides = array<i32>} : memref<16x128xf32, #tpu.memory_space<vmem>>, vector<16x128xf32>,
      %cst_32 = arith.constant -3.40282347E+38 : f32
      %29 = vector.broadcast %cst_32 : f32 to vector<16x128xf32>
      %c0_33 = arith.constant 0 : index
      %c0_34 = arith.constant 0 : index
      %30 = vector.load %arg13[%c0_33, %c0_34] : memref<16x128xf32, #tpu.memory_space<vmem>>, vector<16x128xf32>
      tpu.vector_store %arg13[%c0_33, %c0_34], %29 {strides = array<i32>} : memref<16x128xf32, #tpu.memory_space<vmem>>, vector<16x128xf32>,
      %cst_35 = arith.constant 0.000000e+00 : f32
      %31 = vector.broadcast %cst_35 : f32 to vector<16x128xf32>
      %c0_36 = arith.constant 0 : index
      %c0_37 = arith.constant 0 : index
      %32 = vector.load %arg14[%c0_36, %c0_37] : memref<16x128xf32, #tpu.memory_space<vmem>>, vector<16x128xf32>
      tpu.vector_store %arg14[%c0_36, %c0_37], %31 {strides = array<i32>} : memref<16x128xf32, #tpu.memory_space<vmem>>, vector<16x128xf32>,
    } else {
    }
    %c0 = arith.constant 0 : index
    %c0_1 = arith.constant 0 : index
    %c0_2 = arith.constant 0 : index
    %3 = vector.load %arg2[%c0, %c0_1, %c0_2] : memref<8x16x16xbf16, #tpu.memory_space<vmem>>, vector<8x16x16xbf16>
    %4 = vector.shape_cast %3 : vector<8x16x16xbf16> to vector<128x16xbf16>
    %c0_3 = arith.constant 0 : index
    %c0_4 = arith.constant 0 : index
    %5 = vector.load %arg3[%c0_3, %c0_4] : memref<16x384xbf16, #tpu.memory_space<vmem>>, vector<16x384xbf16>
    %cst = arith.constant dense<0.000000e+00> : vector<128x384xf32>
    %6 = tpu.matmul %4, %5, %cst {dimension_numbers = #tpu.dot_dimension_numbers<[1], [0], [0], [1], [0, 0, 1, 1], [], []>} : vector<128x16xbf16>, vector<16x384xbf16>, vector<128x384xf32> -> vector<128x384xf32>
    %c0_5 = arith.constant 0 : index
    %c0_6 = arith.constant 0 : index
    %7 = vector.load %arg4[%c0_5, %c0_6] : memref<1x384xf32, #tpu.memory_space<vmem>>, vector<1x384xf32>
    %8 = vector.broadcast %7 : vector<1x384xf32> to vector<128x384xf32>
    %9 = arith.addf %6, %8 : vector<128x384xf32>
    %10 = vector.shape_cast %9 : vector<128x384xf32> to vector<8x16x384xf32>
    %c0_7 = arith.constant 0 : index
    %c0_8 = arith.constant 0 : index
    %c0_9 = arith.constant 0 : index
    %11 = vector.load %arg11[%c0_7, %c0_8, %c0_9] : memref<8x16x384xf32, #tpu.memory_space<vmem>>, vector<8x16x384xf32>
    tpu.vector_store %arg11[%c0_7, %c0_8, %c0_9], %10 {strides = array<i32>} : memref<8x16x384xf32, #tpu.memory_space<vmem>>, vector<8x16x384xf32>,
    %c0_10 = arith.constant 0 : index
    %c0_11 = arith.constant 0 : index
    %12 = vector.load %arg6[%c0_10, %c0_11] : memref<1x384xf32, #tpu.memory_space<vmem>>, vector<1x384xf32>
    %13 = vector.shape_cast %12 : vector<1x384xf32> to vector<1x384xf32>
    %14 = vector.broadcast %13 : vector<1x384xf32> to vector<16x384xf32>
    %c8_i32 = arith.constant 8 : i32
    %15 = arith.muli %arg1, %c8_i32 : i32
    %c0_12 = arith.constant 0 : index
    %c0_13 = arith.constant 0 : index
    %16 = vector.load %arg12[%c0_12, %c0_13] : memref<16x128xf32, #tpu.memory_space<vmem>>, vector<16x128xf32>
    %c0_14 = arith.constant 0 : index
    %c0_15 = arith.constant 0 : index
    %17 = vector.load %arg13[%c0_14, %c0_15] : memref<16x128xf32, #tpu.memory_space<vmem>>, vector<16x128xf32>
    %c0_16 = arith.constant 0 : index
    %c0_17 = arith.constant 0 : index
    %18 = vector.load %arg14[%c0_16, %c0_17] : memref<16x128xf32, #tpu.memory_space<vmem>>, vector<16x128xf32>
    %c0_i32_18 = arith.constant 0 : i32
    %c8_i32_19 = arith.constant 8 : i32
    %19 = arith.addi %c0_i32_18, %c8_i32_19 : i32
    %c1_i32 = arith.constant 1 : i32
    %20:3 = scf.for %arg15 = %c0_i32_18 to %19 step %c1_i32 iter_args(%arg16 = %16, %arg17 = %17, %arg18 = %18) -> (vector<16x128xf32>, vector<16x128xf32>, vector<16x128xf32>)  : i32 {
      %27 = arith.index_cast %arg15 : i32 to index
      %c0_29 = arith.constant 0 : index
      %c0_30 = arith.constant 0 : index
      %28 = vector.load %arg11[%27, %c0_29, %c0_30] : memref<8x16x384xf32, #tpu.memory_space<vmem>>, vector<1x16x384xf32>
      %29 = vector.shape_cast %28 : vector<1x16x384xf32> to vector<16x384xf32>
      %c0_31 = arith.constant 0 : index
      %c0_32 = arith.constant 0 : index
      %30 = vector.load %arg5[%c0_31, %c0_32] : memref<128x384xf32, #tpu.memory_space<vmem>>, vector<128x384xf32>
      %cst_33 = arith.constant dense<0.000000e+00> : vector<16x384xf32>
      %31 = tpu.matmul %arg16, %30, %cst_33 {dimension_numbers = #tpu.dot_dimension_numbers<[1], [0], [0], [1], [0, 0, 1, 1], [], []>} : vector<16x128xf32>, vector<128x384xf32>, vector<16x384xf32> -> vector<16x384xf32>
      %32 = arith.addf %31, %14 : vector<16x384xf32>
      %33 = vector.extract_strided_slice %29 {offsets = [0, 0], sizes = [16, 128], strides = [1, 1]} : vector<16x384xf32> to vector<16x128xf32>
      %34 = vector.extract_strided_slice %29 {offsets = [0, 128], sizes = [16, 128], strides = [1, 1]} : vector<16x384xf32> to vector<16x128xf32>
      %35 = vector.extract_strided_slice %29 {offsets = [0, 256], sizes = [16, 128], strides = [1, 1]} : vector<16x384xf32> to vector<16x128xf32>
      %36 = vector.extract_strided_slice %32 {offsets = [0, 0], sizes = [16, 128], strides = [1, 1]} : vector<16x384xf32> to vector<16x128xf32>
      %37 = vector.extract_strided_slice %32 {offsets = [0, 128], sizes = [16, 128], strides = [1, 1]} : vector<16x384xf32> to vector<16x128xf32>
      %38 = vector.extract_strided_slice %32 {offsets = [0, 256], sizes = [16, 128], strides = [1, 1]} : vector<16x384xf32> to vector<16x128xf32>
      %39 = arith.addf %33, %36 : vector<16x128xf32>
      %40 = arith.negf %39 : vector<16x128xf32>
      %41 = math.exp %40 : vector<16x128xf32>
      %cst_34 = arith.constant 1.000000e+00 : f32
      %42 = vector.broadcast %cst_34 : f32 to vector<16x128xf32>
      %43 = arith.addf %42, %41 : vector<16x128xf32>
      %44 = arith.divf %42, %43 : vector<16x128xf32>
      %45 = arith.addf %34, %37 : vector<16x128xf32>
      %46 = arith.negf %45 : vector<16x128xf32>
      %47 = math.exp %46 : vector<16x128xf32>
      %cst_35 = arith.constant 1.000000e+00 : f32
      %48 = vector.broadcast %cst_35 : f32 to vector<16x128xf32>
      %49 = arith.addf %48, %47 : vector<16x128xf32>
      %50 = arith.divf %48, %49 : vector<16x128xf32>
      %51 = arith.mulf %44, %38 : vector<16x128xf32>
      %52 = arith.addf %35, %51 : vector<16x128xf32>
      %53 = math.tanh %52 : vector<16x128xf32>
      %cst_36 = arith.constant 1.000000e+00 : f32
      %54 = vector.broadcast %cst_36 : f32 to vector<16x128xf32>
      %55 = arith.subf %54, %50 : vector<16x128xf32>
      %56 = arith.mulf %55, %53 : vector<16x128xf32>
      %57 = arith.mulf %50, %arg16 : vector<16x128xf32>
      %58 = arith.addf %56, %57 : vector<16x128xf32>
      %59 = arith.addi %15, %arg15 : i32
      %c8_i32_37 = arith.constant 8 : i32
      %60 = arith.cmpi slt, %59, %c8_i32_37 : i32
      %61 = arith.maximumf %arg17, %58 : vector<16x128xf32>
      %62 = arith.select %60, %61, %arg17 : vector<16x128xf32>
      %63 = arith.addf %arg18, %58 : vector<16x128xf32>
      %64 = arith.select %60, %63, %arg18 : vector<16x128xf32>
      scf.yield %58, %62, %64 : vector<16x128xf32>, vector<16x128xf32>, vector<16x128xf32>
    }
    %c8_i32_20 = arith.constant 8 : i32
    %c0_21 = arith.constant 0 : index
    %c0_22 = arith.constant 0 : index
    %21 = vector.load %arg12[%c0_21, %c0_22] : memref<16x128xf32, #tpu.memory_space<vmem>>, vector<16x128xf32>
    tpu.vector_store %arg12[%c0_21, %c0_22], %20#0 {strides = array<i32>} : memref<16x128xf32, #tpu.memory_space<vmem>>, vector<16x128xf32>,
    %c0_23 = arith.constant 0 : index
    %c0_24 = arith.constant 0 : index
    %22 = vector.load %arg13[%c0_23, %c0_24] : memref<16x128xf32, #tpu.memory_space<vmem>>, vector<16x128xf32>
    tpu.vector_store %arg13[%c0_23, %c0_24], %20#1 {strides = array<i32>} : memref<16x128xf32, #tpu.memory_space<vmem>>, vector<16x128xf32>,
    %c0_25 = arith.constant 0 : index
    %c0_26 = arith.constant 0 : index
    %23 = vector.load %arg14[%c0_25, %c0_26] : memref<16x128xf32, #tpu.memory_space<vmem>>, vector<16x128xf32>
    tpu.vector_store %arg14[%c0_25, %c0_26], %20#2 {strides = array<i32>} : memref<16x128xf32, #tpu.memory_space<vmem>>, vector<16x128xf32>,
    %c0_i32_27 = arith.constant 0 : i32
    %24 = arith.cmpi eq, %arg1, %c0_i32_27 : i32
    %25 = arith.extui %24 : i1 to i32
    %c0_i32_28 = arith.constant 0 : i32
    %26 = arith.cmpi ne, %25, %c0_i32_28 : i32
    scf.if %26 {
      %cst_29 = arith.constant 1.250000e-01 : f32
      %27 = vector.broadcast %cst_29 : f32 to vector<16x128xf32>
      %28 = arith.mulf %20#2, %27 : vector<16x128xf32>
      %c0_30 = arith.constant 0 : index
      %c0_31 = arith.constant 0 : index
      %29 = vector.load %arg7[%c0_30, %c0_31] : memref<128x128xf32, #tpu.memory_space<vmem>>, vector<128x128xf32>
      %cst_32 = arith.constant dense<0.000000e+00> : vector<16x128xf32>
      %30 = tpu.matmul %20#1, %29, %cst_32 {dimension_numbers = #tpu.dot_dimension_numbers<[1], [0], [0], [1], [0, 0, 1, 1], [], []>} : vector<16x128xf32>, vector<128x128xf32>, vector<16x128xf32> -> vector<16x128xf32>
      %c0_33 = arith.constant 0 : index
      %c0_34 = arith.constant 0 : index
      %31 = vector.load %arg8[%c0_33, %c0_34] : memref<128x128xf32, #tpu.memory_space<vmem>>, vector<128x128xf32>
      %cst_35 = arith.constant dense<0.000000e+00> : vector<16x128xf32>
      %32 = tpu.matmul %28, %31, %cst_35 {dimension_numbers = #tpu.dot_dimension_numbers<[1], [0], [0], [1], [0, 0, 1, 1], [], []>} : vector<16x128xf32>, vector<128x128xf32>, vector<16x128xf32> -> vector<16x128xf32>
      %33 = arith.addf %30, %32 : vector<16x128xf32>
      %c0_36 = arith.constant 0 : index
      %c0_37 = arith.constant 0 : index
      %34 = vector.load %arg9[%c0_36, %c0_37] : memref<1x128xf32, #tpu.memory_space<vmem>>, vector<1x128xf32>
      %35 = vector.broadcast %34 : vector<1x128xf32> to vector<16x128xf32>
      %36 = arith.addf %33, %35 : vector<16x128xf32>
      %c0_38 = arith.constant 0 : index
      %c0_39 = arith.constant 0 : index
      %37 = vector.load %arg10[%c0_38, %c0_39] : memref<16x128xf32, #tpu.memory_space<vmem>>, vector<16x128xf32>
      tpu.vector_store %arg10[%c0_38, %c0_39], %36 {strides = array<i32>} : memref<16x128xf32, #tpu.memory_space<vmem>>, vector<16x128xf32>,
    } else {
    }
    return
  }
  func.func @transform_0(%arg0: i32, %arg1: i32) -> (i32, i32, i32) {
    %c0_i32 = arith.constant 0 : i32
    %c0_i32_0 = arith.constant 0 : i32
    return %arg1, %arg0, %c0_i32 : i32, i32, i32
  }
  func.func @transform_1(%arg0: i32, %arg1: i32) -> (i32, i32) {
    %c0_i32 = arith.constant 0 : i32
    %c0_i32_0 = arith.constant 0 : i32
    %c0_i32_1 = arith.constant 0 : i32
    return %c0_i32, %c0_i32_0 : i32, i32
  }
  func.func @transform_2(%arg0: i32, %arg1: i32) -> (i32, i32) {
    %c0_i32 = arith.constant 0 : i32
    %c0_i32_0 = arith.constant 0 : i32
    %c0_i32_1 = arith.constant 0 : i32
    return %c0_i32, %c0_i32_0 : i32, i32
  }
  func.func @transform_3(%arg0: i32, %arg1: i32) -> (i32, i32) {
    %c0_i32 = arith.constant 0 : i32
    %c0_i32_0 = arith.constant 0 : i32
    %c0_i32_1 = arith.constant 0 : i32
    return %c0_i32, %c0_i32_0 : i32, i32
  }
  func.func @transform_4(%arg0: i32, %arg1: i32) -> (i32, i32) {
    %c0_i32 = arith.constant 0 : i32
    %c0_i32_0 = arith.constant 0 : i32
    %c0_i32_1 = arith.constant 0 : i32
    return %c0_i32, %c0_i32_0 : i32, i32
  }
  func.func @transform_5(%arg0: i32, %arg1: i32) -> (i32, i32) {
    %c0_i32 = arith.constant 0 : i32
    %c0_i32_0 = arith.constant 0 : i32
    %c0_i32_1 = arith.constant 0 : i32
    return %c0_i32, %c0_i32_0 : i32, i32
  }
  func.func @transform_6(%arg0: i32, %arg1: i32) -> (i32, i32) {
    %c0_i32 = arith.constant 0 : i32
    %c0_i32_0 = arith.constant 0 : i32
    %c0_i32_1 = arith.constant 0 : i32
    return %c0_i32, %c0_i32_0 : i32, i32
  }
  func.func @transform_7(%arg0: i32, %arg1: i32) -> (i32, i32) {
    %c0_i32 = arith.constant 0 : i32
    %c0_i32_0 = arith.constant 0 : i32
    %c0_i32_1 = arith.constant 0 : i32
    return %c0_i32, %c0_i32_0 : i32, i32
  }
  func.func @transform_8(%arg0: i32, %arg1: i32) -> (i32, i32) {
    %c0_i32 = arith.constant 0 : i32
    %c0_i32_0 = arith.constant 0 : i32
    return %arg0, %c0_i32 : i32, i32
  }
}

</mosaic_0001>

<llo_original>
// kernel: tpu_custom_call.1
$region0: #{tpu_custom_call.1}
  #allocation0 [shape = 'u32[]', space=smem, size = 0x4, offset = 0x4, fixed_abs, tag = 'smem constant byte address 0x4 - core index']
  #allocation1 [shape = 'u32[144,128]{1,0:T(1,128)}', space=vmem, size = 0x12000, scoped, tag = 'internal scratch']
  #allocation2 [shape = 'f32[8,16,384]{2,1,0:T(8,128)}', space=vmem, size = 0x30000, scoped, tag = 'scratch operand']
  #allocation3 [shape = 'f32[16,128]{1,0:T(8,128)}', space=vmem, size = 0x2000, scoped, tag = 'scratch operand']
  #allocation4 [shape = 'f32[16,128]{1,0:T(8,128)}', space=vmem, size = 0x2000, scoped, tag = 'scratch operand']
  #allocation5 [shape = 'f32[16,128]{1,0:T(8,128)}', space=vmem, size = 0x2000, scoped, tag = 'scratch operand']
  %s0 = inlined_call_operand.hbm [shape: bf16[8,16,16], index: 0, kind: input, shape index: {}]
  %s1 = inlined_call_operand.hbm [shape: bf16[16,384], index: 1, kind: input, shape index: {}]
  %s2 = inlined_call_operand.vmem [shape: f32[1,384], index: 2, kind: input, shape index: {}]
  %s3 = inlined_call_operand.hbm [shape: f32[128,384], index: 3, kind: input, shape index: {}]
  %s4 = inlined_call_operand.vmem [shape: f32[1,384], index: 4, kind: input, shape index: {}]
  %s5 = inlined_call_operand.hbm [shape: f32[128,128], index: 5, kind: input, shape index: {}]
  %s6 = inlined_call_operand.hbm [shape: f32[128,128], index: 6, kind: input, shape index: {}]
  %s7 = inlined_call_operand.vmem [shape: f32[1,128], index: 7, kind: input, shape index: {}]
  %s8 = inlined_call_operand.hbm [shape: f32[16,128], index: 8, kind: output, shape index: {}]
  %s9 = sld [smem:[#allocation0]]
  $region77: #{tpu_custom_call.1} parent=0
    _
  %s11 = ssub.s32 1, %s9
  %s12 = scalar_select 0, %s11, %s9
  $region1: #{tpu_custom_call.1} parent=0
    #allocation6 [shape = 'u8[32768]{0}', space=vmem, size = 0x8000, scoped, tag = 'input window, operand 0, single buffered']
    #allocation7 [shape = 's32[1]{0}', space=sflag, size = 0x4, scoped, tag = 'scoped memory for tpu_custom_call.1']
    #allocation8 [shape = 's32[1]{0}', space=sflag, size = 0x4, scoped, tag = 'scoped memory for tpu_custom_call.1']
    #allocation9 [shape = 'u8[12288]{0}', space=vmem, size = 0x3000, scoped, tag = 'input window, operand 1, single buffered']
    #allocation10 [shape = 's32[1]{0}', space=sflag, size = 0x4, scoped, tag = 'scoped memory for tpu_custom_call.1']
    #allocation11 [shape = 'u8[196608]{0}', space=vmem, size = 0x30000, scoped, tag = 'input window, operand 3, single buffered']
    #allocation12 [shape = 'u8[65536]{0}', space=vmem, size = 0x10000, scoped, tag = 'input window, operand 5, single buffered']
    #allocation13 [shape = 's32[1]{0}', space=sflag, size = 0x4, scoped, tag = 'scoped memory for tpu_custom_call.1']
    #allocation14 [shape = 'u8[65536]{0}', space=vmem, size = 0x10000, scoped, tag = 'input window, operand 6, single buffered']
    #allocation15 [shape = 'u8[8192]{0}', space=vmem, size = 0x2000, scoped, tag = 'output window, operand 0, single buffered']
    %13 = vsyncpa [#allocation7], 0
    %14 = vsyncpa [#allocation10], 0
    %15 = vsyncpa [#allocation13], 0
    %16 = vsyncpa [#allocation8], 0
    // Predicated region
    $region2: #{tpu_custom_call.1} parent=1 // pred_check
      _
    $region3: #{tpu_custom_call.1} parent=1 // pred_check_branch
      %18 = sbr.rel (0) target = $region5
    $region4: #{tpu_custom_call.1} parent=1 // pred_region
      %s20 = ssub.s32 1024, 1024
      %21 = vsyncadd [#allocation7], %s20
      %s22 = sshll.u32 [#allocation6], 4
      %s23 = int_to_ptr.vmem [resolvable:$true] %s22
      %28 = dma.hbm_to_vmem [thread:$0]  %s0, 1024, %s23, [#allocation7], 64, 64, 4
    $region5: #{tpu_custom_call.1} parent=1 // pred_fallthru
      _
    // Predicated region
    $region6: #{tpu_custom_call.1} parent=1 // pred_check
      _
    $region7: #{tpu_custom_call.1} parent=1 // pred_check_branch
      %30 = sbr.rel (0) target = $region9
    $region8: #{tpu_custom_call.1} parent=1 // pred_region
      %s32 = ssub.s32 384, 384
      %33 = vsyncadd [#allocation10], %s32
      %s34 = sshll.u32 [#allocation9], 4
      %s35 = int_to_ptr.vmem [resolvable:$true] %s34
      %40 = dma.hbm_to_vmem [thread:$0]  %s1, 384, %s35, [#allocation10], 192, 192, 12
    $region9: #{tpu_custom_call.1} parent=1 // pred_fallthru
      _
    // Predicated region
    $region10: #{tpu_custom_call.1} parent=1 // pred_check
      _
    $region11: #{tpu_custom_call.1} parent=1 // pred_check_branch
      %42 = sbr.rel (0) target = $region13
    $region12: #{tpu_custom_call.1} parent=1 // pred_region
      _
    $region13: #{tpu_custom_call.1} parent=1 // pred_fallthru
      _
    // Predicated region
    $region14: #{tpu_custom_call.1} parent=1 // pred_check
      _
    $region15: #{tpu_custom_call.1} parent=1 // pred_check_branch
      %44 = sbr.rel (0) target = $region17
    $region16: #{tpu_custom_call.1} parent=1 // pred_region
      %s46 = ssub.s32 6144, 6144
      %47 = vsyncadd [#allocation10], %s46
      %s48 = sshll.u32 [#allocation11], 4
      %s49 = int_to_ptr.vmem [resolvable:$true] %s48
      %54 = dma.hbm_to_vmem [thread:$0]  %s3, 6144, %s49, [#allocation10], 384, 384, 24
    $region17: #{tpu_custom_call.1} parent=1 // pred_fallthru
      _
    // Predicated region
    $region18: #{tpu_custom_call.1} parent=1 // pred_check
      _
    $region19: #{tpu_custom_call.1} parent=1 // pred_check_branch
      %56 = sbr.rel (0) target = $region21
    $region20: #{tpu_custom_call.1} parent=1 // pred_region
      _
    $region21: #{tpu_custom_call.1} parent=1 // pred_fallthru
      _
    // Predicated region
    $region22: #{tpu_custom_call.1} parent=1 // pred_check
      _
    $region23: #{tpu_custom_call.1} parent=1 // pred_check_branch
      %58 = sbr.rel (0) target = $region25
    $region24: #{tpu_custom_call.1} parent=1 // pred_region
      %s60 = ssub.s32 2048, 2048
      %61 = vsyncadd [#allocation13], %s60
      %s62 = sshll.u32 [#allocation12], 4
      %s63 = int_to_ptr.vmem [resolvable:$true] %s62
      %68 = dma.hbm_to_vmem [thread:$0]  %s5, 2048, %s63, [#allocation13], 128, 128, 8
    $region25: #{tpu_custom_call.1} parent=1 // pred_fallthru
      _
    // Predicated region
    $region26: #{tpu_custom_call.1} parent=1 // pred_check
      _
    $region27: #{tpu_custom_call.1} parent=1 // pred_check_branch
      %70 = sbr.rel (0) target = $region29
    $region28: #{tpu_custom_call.1} parent=1 // pred_region
      %s72 = ssub.s32 2048, 2048
      %73 = vsyncadd [#allocation13], %s72
      %s74 = sshll.u32 [#allocation14], 4
      %s75 = int_to_ptr.vmem [resolvable:$true] %s74
      %80 = dma.hbm_to_vmem [thread:$0]  %s6, 2048, %s75, [#allocation13], 128, 128, 8
    $region29: #{tpu_custom_call.1} parent=1 // pred_fallthru
      _
    // Predicated region
    $region30: #{tpu_custom_call.1} parent=1 // pred_check
      _
    $region31: #{tpu_custom_call.1} parent=1 // pred_check_branch
      %82 = sbr.rel (0) target = $region33
    $region32: #{tpu_custom_call.1} parent=1 // pred_region
      _
    $region33: #{tpu_custom_call.1} parent=1 // pred_fallthru
      _
    // Predicated region
    $region34: #{tpu_custom_call.1} parent=1 // pred_check
      _
    $region35: #{tpu_custom_call.1} parent=1 // pred_check_branch
      %84 = sbr.rel (0) target = $region37
    $region36: #{tpu_custom_call.1} parent=1 // pred_region
      %85 = dma.done [#allocation7], 1024
    $region37: #{tpu_custom_call.1} parent=1 // pred_fallthru
      _
    // Predicated region
    $region38: #{tpu_custom_call.1} parent=1 // pred_check
      _
    $region39: #{tpu_custom_call.1} parent=1 // pred_check_branch
      %87 = sbr.rel (0) target = $region41
    $region40: #{tpu_custom_call.1} parent=1 // pred_region
      %88 = dma.done [#allocation10], 384
    $region41: #{tpu_custom_call.1} parent=1 // pred_fallthru
      _
    // Predicated region
    $region42: #{tpu_custom_call.1} parent=1 // pred_check
      _
    $region43: #{tpu_custom_call.1} parent=1 // pred_check_branch
      %90 = sbr.rel (0) target = $region45
    $region44: #{tpu_custom_call.1} parent=1 // pred_region
      %91 = dma.done [#allocation10], 6144
    $region45: #{tpu_custom_call.1} parent=1 // pred_fallthru
      _
    // Predicated region
    $region46: #{tpu_custom_call.1} parent=1 // pred_check
      _
    $region47: #{tpu_custom_call.1} parent=1 // pred_check_branch
      %93 = sbr.rel (0) target = $region49
    $region48: #{tpu_custom_call.1} parent=1 // pred_region
      %94 = dma.done [#allocation13], 2048
    $region49: #{tpu_custom_call.1} parent=1 // pred_fallthru
      _
    // Predicated region
    $region50: #{tpu_custom_call.1} parent=1 // pred_check
      _
    $region51: #{tpu_custom_call.1} parent=1 // pred_check_branch
      %96 = sbr.rel (0) target = $region53
    $region52: #{tpu_custom_call.1} parent=1 // pred_region
      %97 = dma.done [#allocation13], 2048
    $region53: #{tpu_custom_call.1} parent=1 // pred_fallthru
      _
    %p99 = scmp.eq.s32.totalorder 0, 0
    // Predicated region
    $region54: #{tpu_custom_call.1} parent=1 // pred_check
      %p100 = pneg %p99
    $region55: #{tpu_custom_call.1} parent=1 // pred_check_branch
      %102 = sbr.rel (%p100) target = $region57
    $region56: #{tpu_custom_call.1} parent=1 // pred_region
      %103 = vst [vmem:[#allocation3] sm:$0xff] 0.0
      %104 = vst [vmem:[#allocation3 + $0x8] sm:$0xff] 0.0
      %105 = vst [vmem:[#allocation4] sm:$0xff] -3.4028235e+38
      %106 = vst [vmem:[#allocation4 + $0x8] sm:$0xff] -3.4028235e+38
      %107 = vst [vmem:[#allocation5] sm:$0xff] 0.0
      %108 = vst [vmem:[#allocation5 + $0x8] sm:$0xff] 0.0
    $region57: #{tpu_custom_call.1} parent=1 // pred_fallthru
      _
    %v109 = vld [vmem:[#allocation6] sm:$0xf]
    %v110 = vld [vmem:[#allocation6 + $0x4] sm:$0xf]
    %v111 = vld [vmem:[#allocation6 + $0x8] sm:$0xf]
    %v112 = vld [vmem:[#allocation6 + $0xc] sm:$0xf]
    %v113 = vld [vmem:[#allocation6 + $0x10] sm:$0xf]
    %v114 = vld [vmem:[#allocation6 + $0x14] sm:$0xf]
    %v115 = vld [vmem:[#allocation6 + $0x18] sm:$0xf]
    %v116 = vld [vmem:[#allocation6 + $0x1c] sm:$0xf]
    %v117 = vld [vmem:[#allocation6 + $0x20] sm:$0xf]
    %v118 = vld [vmem:[#allocation6 + $0x24] sm:$0xf]
    %v119 = vld [vmem:[#allocation6 + $0x28] sm:$0xf]
    %v120 = vld [vmem:[#allocation6 + $0x2c] sm:$0xf]
    %v121 = vld [vmem:[#allocation6 + $0x30] sm:$0xf]
    %v122 = vld [vmem:[#allocation6 + $0x34] sm:$0xf]
    %v123 = vld [vmem:[#allocation6 + $0x38] sm:$0xf]
    %v124 = vld [vmem:[#allocation6 + $0x3c] sm:$0xf]
    %v125 = vld [vmem:[#allocation9] sm:$0xff]
    %v126 = vld [vmem:[#allocation9 + $0x8] sm:$0xf]
    %v127 = vld [vmem:[#allocation9 + $0xc] sm:$0xff]
    %v128 = vld [vmem:[#allocation9 + $0x14] sm:$0xf]
    %v129 = vld [vmem:[%s2] sm:$0x7]
    %v131 = vlaneseq
    %v132 = vshrl.u32 %v131, 7
    %v133 = vsub.s32 0, %v132
    %v134 = vrot.slane %v129, %v133
    %v135 = vlaneseq
    %v136 = vshrl.u32 %v135, 7
    %v137 = vsub.s32 1, %v136
    %v138 = vrot.slane %v129, %v137
    %v139 = vlaneseq
    %v140 = vshrl.u32 %v139, 7
    %v141 = vsub.s32 2, %v140
    %v142 = vrot.slane %v129, %v141
    %v162 = vunpack.c.l.b16 %v109
    %v163 = vunpack.c.l.b16 %v110
    %v164 = vunpack.c.l.b16 %v111
    %v165 = vunpack.c.l.b16 %v112
    %v166 = vunpack.c.l.b16 %v113
    %v167 = vunpack.c.l.b16 %v114
    %v168 = vunpack.c.l.b16 %v115
    %v169 = vunpack.c.l.b16 %v116
    %v170 = vunpack.c.l.b16 %v117
    %v171 = vunpack.c.l.b16 %v118
    %v172 = vunpack.c.l.b16 %v119
    %v173 = vunpack.c.l.b16 %v120
    %v174 = vunpack.c.l.b16 %v121
    %v175 = vunpack.c.l.b16 %v122
    %v176 = vunpack.c.l.b16 %v123
    %v177 = vunpack.c.l.b16 %v124
    %v178 = vpack.c.b16 %v163, %v162
    %v179 = vpack.c.b16 %v165, %v164
    %v180 = vpack.c.b16 %v167, %v166
    %v181 = vpack.c.b16 %v169, %v168
    %v182 = vpack.c.b16 %v171, %v170
    %v183 = vpack.c.b16 %v173, %v172
    %v184 = vpack.c.b16 %v175, %v174
    %v185 = vpack.c.b16 %v177, %v176
    %v190 = vunpack.c.l.b16 %v125
    %v191 = vunpack.c.h.b16 %v125
    %v192 = vunpack.c.l.b16 %v126
    %v193 = vunpack.c.l.b16 %v127
    %v194 = vunpack.c.h.b16 %v127
    %v195 = vunpack.c.l.b16 %v128
    %v196 = vpack.c.b16 %v193, %v190
    %v197 = vpack.c.b16 %v194, %v191
    %v198 = vpack.c.b16 %v195, %v192
    %vm202 = vcmask 130048
    %v204 = vsel %vm202, %v178, 0
    %v207 = vsel %vm202, %v179, 0
    %v210 = vsel %vm202, %v180, 0
    %v213 = vsel %vm202, %v181, 0
    %v216 = vsel %vm202, %v182, 0
    %v219 = vsel %vm202, %v183, 0
    %v222 = vsel %vm202, %v184, 0
    %v225 = vsel %vm202, %v185, 0
    %227 = vmatprep.subr.bf16.mxu0 %v197
    %228 = vmatpush1.bf16.msra.mxu0 %v196
    %229 = vmatprep.subr.bf16.mxu0 0
    %230 = vmatpush1.bf16.msra.mxu0 0
    %231 = vmatprep.subr.bf16.mxu0 0
    %232 = vmatpush1.bf16.msra.mxu0 0
    %233 = vmatprep.subr.bf16.mxu0 0
    %234 = vmatpush1.bf16.msra.mxu0 0
    %235 = vmatprep.subr.bf16.mxu0 0
    %236 = vmatpush1.bf16.msra.mxu0 0
    %237 = vmatprep.subr.bf16.mxu0 0
    %238 = vmatpush1.bf16.msra.mxu0 0
    %239 = vmatprep.subr.bf16.mxu0 0
    %240 = vmatpush1.bf16.msra.mxu0 0
    %241 = vmatprep.subr.bf16.mxu0 0
    %242 = vmatpush1.bf16.msra.mxu0 0
    %243 = vmatprep.subr.bf16.mxu0 0
    %244 = vmatpush1.bf16.msra.mxu0 0
    %245 = vmatprep.subr.bf16.mxu0 0
    %246 = vmatpush1.bf16.msra.mxu0 0
    %247 = vmatprep.subr.bf16.mxu0 0
    %248 = vmatpush1.bf16.msra.mxu0 0
    %249 = vmatprep.subr.bf16.mxu0 0
    %250 = vmatpush1.bf16.msra.mxu0 0
    %251 = vmatprep.subr.bf16.mxu0 0
    %252 = vmatpush1.bf16.msra.mxu0 0
    %253 = vmatprep.subr.bf16.mxu0 0
    %254 = vmatpush1.bf16.msra.mxu0 0
    %255 = vmatprep.subr.bf16.mxu0 0
    %256 = vmatpush1.bf16.msra.mxu0 0
    %257 = vmatprep.subr.bf16.mxu0 0
    %258 = vmatpush1.bf16.msra.mxu0 0
    %259 = vmatprep.mubr.bf16.mxu0 0
    %260 = vmatmul.mubr.bf16.gmra.mrb[0].mxu0 %v204
    %v261 = vpop.f32.mrb[0].mxu0
    %v262 = vadd.f32 %v134, %v261
    %v263 = vpop.f32.mrb[0].mxu0
    %v264 = vadd.f32 %v138, %v263
    %v265 = vpop.f32.mrb[0].mxu0
    %v266 = vadd.f32 %v134, %v265
    %v267 = vpop.f32.mrb[0].mxu0
    %v268 = vadd.f32 %v138, %v267
    %269 = vmatprep.mubr.bf16.mxu0 0
    %270 = vmatmul.mubr.bf16.gmra.mrb[0].mxu0 %v207
    %v271 = vpop.f32.mrb[0].mxu0
    %v272 = vadd.f32 %v134, %v271
    %v273 = vpop.f32.mrb[0].mxu0
    %v274 = vadd.f32 %v138, %v273
    %v275 = vpop.f32.mrb[0].mxu0
    %v276 = vadd.f32 %v134, %v275
    %v277 = vpop.f32.mrb[0].mxu0
    %v278 = vadd.f32 %v138, %v277
    %279 = vmatprep.mubr.bf16.mxu0 0
    %280 = vmatmul.mubr.bf16.gmra.mrb[0].mxu0 %v210
    %v281 = vpop.f32.mrb[0].mxu0
    %v282 = vadd.f32 %v134, %v281
    %v283 = vpop.f32.mrb[0].mxu0
    %v284 = vadd.f32 %v138, %v283
    %v285 = vpop.f32.mrb[0].mxu0
    %v286 = vadd.f32 %v134, %v285
    %v287 = vpop.f32.mrb[0].mxu0
    %v288 = vadd.f32 %v138, %v287
    %289 = vmatprep.mubr.bf16.mxu0 0
    %290 = vmatmul.mubr.bf16.gmra.mrb[0].mxu0 %v213
    %v291 = vpop.f32.mrb[0].mxu0
    %v292 = vadd.f32 %v134, %v291
    %v293 = vpop.f32.mrb[0].mxu0
    %v294 = vadd.f32 %v138, %v293
    %v295 = vpop.f32.mrb[0].mxu0
    %v296 = vadd.f32 %v134, %v295
    %v297 = vpop.f32.mrb[0].mxu0
    %v298 = vadd.f32 %v138, %v297
    %299 = vmatprep.mubr.bf16.mxu0 0
    %300 = vmatmul.mubr.bf16.gmra.mrb[0].mxu0 %v216
    %v301 = vpop.f32.mrb[0].mxu0
    %v302 = vadd.f32 %v134, %v301
    %v303 = vpop.f32.mrb[0].mxu0
    %v304 = vadd.f32 %v138, %v303
    %v305 = vpop.f32.mrb[0].mxu0
    %v306 = vadd.f32 %v134, %v305
    %v307 = vpop.f32.mrb[0].mxu0
    %v308 = vadd.f32 %v138, %v307
    %309 = vmatprep.mubr.bf16.mxu0 0
    %310 = vmatmul.mubr.bf16.gmra.mrb[0].mxu0 %v219
    %v311 = vpop.f32.mrb[0].mxu0
    %v312 = vadd.f32 %v134, %v311
    %v313 = vpop.f32.mrb[0].mxu0
    %v314 = vadd.f32 %v138, %v313
    %v315 = vpop.f32.mrb[0].mxu0
    %v316 = vadd.f32 %v134, %v315
    %v317 = vpop.f32.mrb[0].mxu0
    %v318 = vadd.f32 %v138, %v317
    %319 = vmatprep.mubr.bf16.mxu0 0
    %320 = vmatmul.mubr.bf16.gmra.mrb[0].mxu0 %v222
    %v321 = vpop.f32.mrb[0].mxu0
    %v322 = vadd.f32 %v134, %v321
    %v323 = vpop.f32.mrb[0].mxu0
    %v324 = vadd.f32 %v138, %v323
    %v325 = vpop.f32.mrb[0].mxu0
    %v326 = vadd.f32 %v134, %v325
    %v327 = vpop.f32.mrb[0].mxu0
    %v328 = vadd.f32 %v138, %v327
    %329 = vmatprep.mubr.bf16.mxu0 0
    %330 = vmatmul.mubr.bf16.gmra.mrb[0].mxu0 %v225
    %v331 = vpop.f32.mrb[0].mxu0
    %v332 = vadd.f32 %v134, %v331
    %v333 = vpop.f32.mrb[0].mxu0
    %v334 = vadd.f32 %v138, %v333
    %v335 = vpop.f32.mrb[0].mxu0
    %v336 = vadd.f32 %v134, %v335
    %v337 = vpop.f32.mrb[0].mxu0
    %v338 = vadd.f32 %v138, %v337
    %339 = vdwg.mxu0
    %340 = vmatprep.subr.bf16.mxu0 0
    %341 = vmatpush1.bf16.msra.mxu0 %v198
    %342 = vmatprep.subr.bf16.mxu0 0
    %343 = vmatpush1.bf16.msra.mxu0 0
    %344 = vmatprep.subr.bf16.mxu0 0
    %345 = vmatpush1.bf16.msra.mxu0 0
    %346 = vmatprep.subr.bf16.mxu0 0
    %347 = vmatpush1.bf16.msra.mxu0 0
    %348 = vmatprep.subr.bf16.mxu0 0
    %349 = vmatpush1.bf16.msra.mxu0 0
    %350 = vmatprep.subr.bf16.mxu0 0
    %351 = vmatpush1.bf16.msra.mxu0 0
    %352 = vmatprep.subr.bf16.mxu0 0
    %353 = vmatpush1.bf16.msra.mxu0 0
    %354 = vmatprep.subr.bf16.mxu0 0
    %355 = vmatpush1.bf16.msra.mxu0 0
    %356 = vmatprep.subr.bf16.mxu0 0
    %357 = vmatpush1.bf16.msra.mxu0 0
    %358 = vmatprep.subr.bf16.mxu0 0
    %359 = vmatpush1.bf16.msra.mxu0 0
    %360 = vmatprep.subr.bf16.mxu0 0
    %361 = vmatpush1.bf16.msra.mxu0 0
    %362 = vmatprep.subr.bf16.mxu0 0
    %363 = vmatpush1.bf16.msra.mxu0 0
    %364 = vmatprep.subr.bf16.mxu0 0
    %365 = vmatpush1.bf16.msra.mxu0 0
    %366 = vmatprep.subr.bf16.mxu0 0
    %367 = vmatpush1.bf16.msra.mxu0 0
    %368 = vmatprep.subr.bf16.mxu0 0
    %369 = vmatpush1.bf16.msra.mxu0 0
    %370 = vmatprep.subr.bf16.mxu0 0
    %371 = vmatpush1.bf16.msra.mxu0 0
    %372 = vmatprep.mubr.bf16.mxu0 0
    %373 = vmatmul.mubr.bf16.gmra.mrb[0].mxu0 %v204
    %v374 = vpop.f32.mrb[0].mxu0
    %v375 = vadd.f32 %v142, %v374
    %v376 = vpop.f32.mrb[0].mxu0
    %v377 = vpop.f32.mrb[0].mxu0
    %v378 = vadd.f32 %v142, %v377
    %v379 = vpop.f32.mrb[0].mxu0
    %380 = vmatprep.mubr.bf16.mxu0 0
    %381 = vmatmul.mubr.bf16.gmra.mrb[0].mxu0 %v207
    %v382 = vpop.f32.mrb[0].mxu0
    %v383 = vadd.f32 %v142, %v382
    %v384 = vpop.f32.mrb[0].mxu0
    %v385 = vpop.f32.mrb[0].mxu0
    %v386 = vadd.f32 %v142, %v385
    %v387 = vpop.f32.mrb[0].mxu0
    %388 = vmatprep.mubr.bf16.mxu0 0
    %389 = vmatmul.mubr.bf16.gmra.mrb[0].mxu0 %v210
    %v390 = vpop.f32.mrb[0].mxu0
    %v391 = vadd.f32 %v142, %v390
    %v392 = vpop.f32.mrb[0].mxu0
    %v393 = vpop.f32.mrb[0].mxu0
    %v394 = vadd.f32 %v142, %v393
    %v395 = vpop.f32.mrb[0].mxu0
    %396 = vmatprep.mubr.bf16.mxu0 0
    %397 = vmatmul.mubr.bf16.gmra.mrb[0].mxu0 %v213
    %v398 = vpop.f32.mrb[0].mxu0
    %v399 = vadd.f32 %v142, %v398
    %v400 = vpop.f32.mrb[0].mxu0
    %v401 = vpop.f32.mrb[0].mxu0
    %v402 = vadd.f32 %v142, %v401
    %v403 = vpop.f32.mrb[0].mxu0
    %404 = vmatprep.mubr.bf16.mxu0 0
    %405 = vmatmul.mubr.bf16.gmra.mrb[0].mxu0 %v216
    %v406 = vpop.f32.mrb[0].mxu0
    %v407 = vadd.f32 %v142, %v406
    %v408 = vpop.f32.mrb[0].mxu0
    %v409 = vpop.f32.mrb[0].mxu0
    %v410 = vadd.f32 %v142, %v409
    %v411 = vpop.f32.mrb[0].mxu0
    %412 = vmatprep.mubr.bf16.mxu0 0
    %413 = vmatmul.mubr.bf16.gmra.mrb[0].mxu0 %v219
    %v414 = vpop.f32.mrb[0].mxu0
    %v415 = vadd.f32 %v142, %v414
    %v416 = vpop.f32.mrb[0].mxu0
    %v417 = vpop.f32.mrb[0].mxu0
    %v418 = vadd.f32 %v142, %v417
    %v419 = vpop.f32.mrb[0].mxu0
    %420 = vmatprep.mubr.bf16.mxu0 0
    %421 = vmatmul.mubr.bf16.gmra.mrb[0].mxu0 %v222
    %v422 = vpop.f32.mrb[0].mxu0
    %v423 = vadd.f32 %v142, %v422
    %v424 = vpop.f32.mrb[0].mxu0
    %v425 = vpop.f32.mrb[0].mxu0
    %v426 = vadd.f32 %v142, %v425
    %v427 = vpop.f32.mrb[0].mxu0
    %428 = vmatprep.mubr.bf16.mxu0 0
    %429 = vmatmul.mubr.bf16.gmra.mrb[0].mxu0 %v225
    %v430 = vpop.f32.mrb[0].mxu0
    %v431 = vadd.f32 %v142, %v430
    %v432 = vpop.f32.mrb[0].mxu0
    %v433 = vpop.f32.mrb[0].mxu0
    %v434 = vadd.f32 %v142, %v433
    %v435 = vpop.f32.mrb[0].mxu0
    %436 = vdwg.mxu0
    %437 = vst [vmem:[#allocation2] sm:$0xff] %v262
    %438 = vst [vmem:[#allocation2 + $0x8] sm:$0xff] %v264
    %439 = vst [vmem:[#allocation2 + $0x10] sm:$0xff] %v375
    %440 = vst [vmem:[#allocation2 + $0x18] sm:$0xff] %v266
    %441 = vst [vmem:[#allocation2 + $0x20] sm:$0xff] %v268
    %442 = vst [vmem:[#allocation2 + $0x28] sm:$0xff] %v378
    %443 = vst [vmem:[#allocation2 + $0x30] sm:$0xff] %v272
    %444 = vst [vmem:[#allocation2 + $0x38] sm:$0xff] %v274
    %445 = vst [vmem:[#allocation2 + $0x40] sm:$0xff] %v383
    %446 = vst [vmem:[#allocation2 + $0x48] sm:$0xff] %v276
    %447 = vst [vmem:[#allocation2 + $0x50] sm:$0xff] %v278
    %448 = vst [vmem:[#allocation2 + $0x58] sm:$0xff] %v386
    %449 = vst [vmem:[#allocation2 + $0x60] sm:$0xff] %v282
    %450 = vst [vmem:[#allocation2 + $0x68] sm:$0xff] %v284
    %451 = vst [vmem:[#allocation2 + $0x70] sm:$0xff] %v391
    %452 = vst [vmem:[#allocation2 + $0x78] sm:$0xff] %v286
    %453 = vst [vmem:[#allocation2 + $0x80] sm:$0xff] %v288
    %454 = vst [vmem:[#allocation2 + $0x88] sm:$0xff] %v394
    %455 = vst [vmem:[#allocation2 + $0x90] sm:$0xff] %v292
    %456 = vst [vmem:[#allocation2 + $0x98] sm:$0xff] %v294
    %457 = vst [vmem:[#allocation2 + $0xa0] sm:$0xff] %v399
    %458 = vst [vmem:[#allocation2 + $0xa8] sm:$0xff] %v296
    %459 = vst [vmem:[#allocation2 + $0xb0] sm:$0xff] %v298
    %460 = vst [vmem:[#allocation2 + $0xb8] sm:$0xff] %v402
    %461 = vst [vmem:[#allocation2 + $0xc0] sm:$0xff] %v302
    %462 = vst [vmem:[#allocation2 + $0xc8] sm:$0xff] %v304
    %463 = vst [vmem:[#allocation2 + $0xd0] sm:$0xff] %v407
    %464 = vst [vmem:[#allocation2 + $0xd8] sm:$0xff] %v306
    %465 = vst [vmem:[#allocation2 + $0xe0] sm:$0xff] %v308
    %466 = vst [vmem:[#allocation2 + $0xe8] sm:$0xff] %v410
    %467 = vst [vmem:[#allocation2 + $0xf0] sm:$0xff] %v312
    %468 = vst [vmem:[#allocation2 + $0xf8] sm:$0xff] %v314
    %469 = vst [vmem:[#allocation2 + $0x100] sm:$0xff] %v415
    %470 = vst [vmem:[#allocation2 + $0x108] sm:$0xff] %v316
    %471 = vst [vmem:[#allocation2 + $0x110] sm:$0xff] %v318
    %472 = vst [vmem:[#allocation2 + $0x118] sm:$0xff] %v418
    %473 = vst [vmem:[#allocation2 + $0x120] sm:$0xff] %v322
    %474 = vst [vmem:[#allocation2 + $0x128] sm:$0xff] %v324
    %475 = vst [vmem:[#allocation2 + $0x130] sm:$0xff] %v423
    %476 = vst [vmem:[#allocation2 + $0x138] sm:$0xff] %v326
    %477 = vst [vmem:[#allocation2 + $0x140] sm:$0xff] %v328
    %478 = vst [vmem:[#allocation2 + $0x148] sm:$0xff] %v426
    %479 = vst [vmem:[#allocation2 + $0x150] sm:$0xff] %v332
    %480 = vst [vmem:[#allocation2 + $0x158] sm:$0xff] %v334
    %481 = vst [vmem:[#allocation2 + $0x160] sm:$0xff] %v431
    %482 = vst [vmem:[#allocation2 + $0x168] sm:$0xff] %v336
    %483 = vst [vmem:[#allocation2 + $0x170] sm:$0xff] %v338
    %484 = vst [vmem:[#allocation2 + $0x178] sm:$0xff] %v434
    %v485 = vld [vmem:[%s4] sm:$0x7]
    %v487 = vlaneseq
    %v488 = vshrl.u32 %v487, 7
    %v489 = vsub.s32 0, %v488
    %v490 = vrot.slane %v485, %v489
    %v491 = vlaneseq
    %v492 = vshrl.u32 %v491, 7
    %v493 = vsub.s32 1, %v492
    %v494 = vrot.slane %v485, %v493
    %v495 = vlaneseq
    %v496 = vshrl.u32 %v495, 7
    %v497 = vsub.s32 2, %v496
    %v498 = vrot.slane %v485, %v497
    %s502 = smul.u32 0, 8
    %v503 = vld [vmem:[#allocation3] sm:$0xff]
    %v504 = vld [vmem:[#allocation3 + $0x8] sm:$0xff]
    %v505 = vld [vmem:[#allocation4] sm:$0xff]
    %v506 = vld [vmem:[#allocation4 + $0x8] sm:$0xff]
    %v507 = vld [vmem:[#allocation5] sm:$0xff]
    %v508 = vld [vmem:[#allocation5 + $0x8] sm:$0xff]
    loop: start=0, step=1, limit=8
    $region58: #{tpu_custom_call.1} parent=1 // loop_pre_header
      _
    $region59: #{tpu_custom_call.1} parent=1 // loop_header
      %s510 = sphi 0, %s514
      %p511 = scmp.ge.s32.totalorder %s510, 8
      %v515 = vphi %v503, %v770
      %v516 = vphi %v504, %v771
      %v517 = vphi %v505, %v779
      %v518 = vphi %v506, %v780
      %v519 = vphi %v507, %v783
      %v520 = vphi %v508, %v784
    $region60: #{tpu_custom_call.1} parent=1 // loop_header_branch
      %513 = sbr.rel (%p511) target = $region64
    $region61: #{tpu_custom_call.1} parent=1 // loop_body
      %s521 = smul.u32 %s510, 6
      %s522 = smul.addr %s521, 8
      %s523 = scalar_lea.vmem [#allocation2], %s522
      %v524 = vld [vmem:[%s523] sm:$0xff]
      %v525 = vld [vmem:[%s523 + $0x8] sm:$0xff]
      %v526 = vld [vmem:[%s523 + $0x10] sm:$0xff]
      %v527 = vld [vmem:[%s523 + $0x18] sm:$0xff]
      %v528 = vld [vmem:[%s523 + $0x20] sm:$0xff]
      %v529 = vld [vmem:[%s523 + $0x28] sm:$0xff]
      %v530 = vld [vmem:[#allocation11] sm:$0xff]
      %v531 = vld [vmem:[#allocation11 + $0x8] sm:$0xff]
      %v532 = vld [vmem:[#allocation11 + $0x10] sm:$0xff]
      %v533 = vld [vmem:[#allocation11 + $0x18] sm:$0xff]
      %v534 = vld [vmem:[#allocation11 + $0x20] sm:$0xff]
      %v535 = vld [vmem:[#allocation11 + $0x28] sm:$0xff]
      %v536 = vld [vmem:[#allocation11 + $0x30] sm:$0xff]
      %v537 = vld [vmem:[#allocation11 + $0x38] sm:$0xff]
      %v538 = vld [vmem:[#allocation11 + $0x40] sm:$0xff]
      %v539 = vld [vmem:[#allocation11 + $0x48] sm:$0xff]
      %v540 = vld [vmem:[#allocation11 + $0x50] sm:$0xff]
      %v541 = vld [vmem:[#allocation11 + $0x58] sm:$0xff]
      %v542 = vld [vmem:[#allocation11 + $0x60] sm:$0xff]
      %v543 = vld [vmem:[#allocation11 + $0x68] sm:$0xff]
      %v544 = vld [vmem:[#allocation11 + $0x70] sm:$0xff]
      %v545 = vld [vmem:[#allocation11 + $0x78] sm:$0xff]
      %v546 = vld [vmem:[#allocation11 + $0x80] sm:$0xff]
      %v547 = vld [vmem:[#allocation11 + $0x88] sm:$0xff]
      %v548 = vld [vmem:[#allocation11 + $0x90] sm:$0xff]
      %v549 = vld [vmem:[#allocation11 + $0x98] sm:$0xff]
      %v550 = vld [vmem:[#allocation11 + $0xa0] sm:$0xff]
      %v551 = vld [vmem:[#allocation11 + $0xa8] sm:$0xff]
      %v552 = vld [vmem:[#allocation11 + $0xb0] sm:$0xff]
      %v553 = vld [vmem:[#allocation11 + $0xb8] sm:$0xff]
      %v554 = vld [vmem:[#allocation11 + $0xc0] sm:$0xff]
      %v555 = vld [vmem:[#allocation11 + $0xc8] sm:$0xff]
      %v556 = vld [vmem:[#allocation11 + $0xd0] sm:$0xff]
      %v557 = vld [vmem:[#allocation11 + $0xd8] sm:$0xff]
      %v558 = vld [vmem:[#allocation11 + $0xe0] sm:$0xff]
      %v559 = vld [vmem:[#allocation11 + $0xe8] sm:$0xff]
      %v560 = vld [vmem:[#allocation11 + $0xf0] sm:$0xff]
      %v561 = vld [vmem:[#allocation11 + $0xf8] sm:$0xff]
      %v562 = vld [vmem:[#allocation11 + $0x100] sm:$0xff]
      %v563 = vld [vmem:[#allocation11 + $0x108] sm:$0xff]
      %v564 = vld [vmem:[#allocation11 + $0x110] sm:$0xff]
      %v565 = vld [vmem:[#allocation11 + $0x118] sm:$0xff]
      %v566 = vld [vmem:[#allocation11 + $0x120] sm:$0xff]
      %v567 = vld [vmem:[#allocation11 + $0x128] sm:$0xff]
      %v568 = vld [vmem:[#allocation11 + $0x130] sm:$0xff]
      %v569 = vld [vmem:[#allocation11 + $0x138] sm:$0xff]
      %v570 = vld [vmem:[#allocation11 + $0x140] sm:$0xff]
      %v571 = vld [vmem:[#allocation11 + $0x148] sm:$0xff]
      %v572 = vld [vmem:[#allocation11 + $0x150] sm:$0xff]
      %v573 = vld [vmem:[#allocation11 + $0x158] sm:$0xff]
      %v574 = vld [vmem:[#allocation11 + $0x160] sm:$0xff]
      %v575 = vld [vmem:[#allocation11 + $0x168] sm:$0xff]
      %v576 = vld [vmem:[#allocation11 + $0x170] sm:$0xff]
      %v577 = vld [vmem:[#allocation11 + $0x178] sm:$0xff]
      %578 = vmatprep.subr.mxu0 %v531
      %579 = vmatpush1.msra.mxu0 %v530
      %580 = vmatprep.subr.mxu0 %v534
      %581 = vmatpush1.msra.mxu0 %v533
      %582 = vmatprep.subr.mxu0 %v537
      %583 = vmatpush1.msra.mxu0 %v536
      %584 = vmatprep.subr.mxu0 %v540
      %585 = vmatpush1.msra.mxu0 %v539
      %586 = vmatprep.subr.mxu0 %v543
      %587 = vmatpush1.msra.mxu0 %v542
      %588 = vmatprep.subr.mxu0 %v546
      %589 = vmatpush1.msra.mxu0 %v545
      %590 = vmatprep.subr.mxu0 %v549
      %591 = vmatpush1.msra.mxu0 %v548
      %592 = vmatprep.subr.mxu0 %v552
      %593 = vmatpush1.msra.mxu0 %v551
      %594 = vmatprep.subr.mxu0 %v555
      %595 = vmatpush1.msra.mxu0 %v554
      %596 = vmatprep.subr.mxu0 %v558
      %597 = vmatpush1.msra.mxu0 %v557
      %598 = vmatprep.subr.mxu0 %v561
      %599 = vmatpush1.msra.mxu0 %v560
      %600 = vmatprep.subr.mxu0 %v564
      %601 = vmatpush1.msra.mxu0 %v563
      %602 = vmatprep.subr.mxu0 %v567
      %603 = vmatpush1.msra.mxu0 %v566
      %604 = vmatprep.subr.mxu0 %v570
      %605 = vmatpush1.msra.mxu0 %v569
      %606 = vmatprep.subr.mxu0 %v573
      %607 = vmatpush1.msra.mxu0 %v572
      %608 = vmatprep.subr.mxu0 %v576
      %609 = vmatpush1.msra.mxu0 %v575
      %610 = vmatprep.subr.mxu0 0.0
      %611 = vmatpush1.msra.mxu0 0.0
      %612 = vmatprep.subr.mxu0 0.0
      %613 = vmatpush1.msra.mxu0 0.0
      %614 = vmatprep.subr.mxu0 0.0
      %615 = vmatpush1.msra.mxu0 0.0
      %616 = vmatprep.subr.mxu0 0.0
      %617 = vmatpush1.msra.mxu0 0.0
      %618 = vmatprep.subr.mxu0 0.0
      %619 = vmatpush1.msra.mxu0 0.0
      %620 = vmatprep.subr.mxu0 0.0
      %621 = vmatpush1.msra.mxu0 0.0
      %622 = vmatprep.subr.mxu0 0.0
      %623 = vmatpush1.msra.mxu0 0.0
      %624 = vmatprep.subr.mxu0 0.0
      %625 = vmatpush1.msra.mxu0 0.0
      %626 = vmatprep.subr.mxu0 0.0
      %627 = vmatpush1.msra.mxu0 0.0
      %628 = vmatprep.subr.mxu0 0.0
      %629 = vmatpush1.msra.mxu0 0.0
      %630 = vmatprep.subr.mxu0 0.0
      %631 = vmatpush1.msra.mxu0 0.0
      %632 = vmatprep.subr.mxu0 0.0
      %633 = vmatpush1.msra.mxu0 0.0
      %634 = vmatprep.subr.mxu0 0.0
      %635 = vmatpush1.msra.mxu0 0.0
      %636 = vmatprep.subr.mxu0 0.0
      %637 = vmatpush1.msra.mxu0 0.0
      %638 = vmatprep.subr.mxu0 0.0
      %639 = vmatpush1.msra.mxu0 0.0
      %640 = vmatprep.subr.mxu0 0.0
      %641 = vmatpush1.msra.mxu0 0.0
      %642 = vmatprep.mubr.f32.mxu0 0.0
      %643 = vmatmul.mubr.f32.gmra.mrb[0].mxu0 %v515
      %v644 = vpop.f32.mrb[0].mxu0
      %v645 = vadd.f32 %v490, %v644
      %v646 = vpop.f32.mrb[0].mxu0
      %v647 = vadd.f32 %v494, %v646
      %648 = vmatprep.mubr.f32.mxu0 0.0
      %649 = vmatmul.mubr.f32.gmra.mrb[0].mxu0 %v516
      %v650 = vpop.f32.mrb[0].mxu0
      %v651 = vadd.f32 %v490, %v650
      %v652 = vpop.f32.mrb[0].mxu0
      %v653 = vadd.f32 %v494, %v652
      %654 = vdwg.mxu0
      %655 = vmatprep.subr.mxu0 0.0
      %656 = vmatpush1.msra.mxu0 %v532
      %657 = vmatprep.subr.mxu0 0.0
      %658 = vmatpush1.msra.mxu0 %v535
      %659 = vmatprep.subr.mxu0 0.0
      %660 = vmatpush1.msra.mxu0 %v538
      %661 = vmatprep.subr.mxu0 0.0
      %662 = vmatpush1.msra.mxu0 %v541
      %663 = vmatprep.subr.mxu0 0.0
      %664 = vmatpush1.msra.mxu0 %v544
      %665 = vmatprep.subr.mxu0 0.0
      %666 = vmatpush1.msra.mxu0 %v547
      %667 = vmatprep.subr.mxu0 0.0
      %668 = vmatpush1.msra.mxu0 %v550
      %669 = vmatprep.subr.mxu0 0.0
      %670 = vmatpush1.msra.mxu0 %v553
      %671 = vmatprep.subr.mxu0 0.0
      %672 = vmatpush1.msra.mxu0 %v556
      %673 = vmatprep.subr.mxu0 0.0
      %674 = vmatpush1.msra.mxu0 %v559
      %675 = vmatprep.subr.mxu0 0.0
      %676 = vmatpush1.msra.mxu0 %v562
      %677 = vmatprep.subr.mxu0 0.0
      %678 = vmatpush1.msra.mxu0 %v565
      %679 = vmatprep.subr.mxu0 0.0
      %680 = vmatpush1.msra.mxu0 %v568
      %681 = vmatprep.subr.mxu0 0.0
      %682 = vmatpush1.msra.mxu0 %v571
      %683 = vmatprep.subr.mxu0 0.0
      %684 = vmatpush1.msra.mxu0 %v574
      %685 = vmatprep.subr.mxu0 0.0
      %686 = vmatpush1.msra.mxu0 %v577
      %687 = vmatprep.subr.mxu0 0.0
      %688 = vmatpush1.msra.mxu0 0.0
      %689 = vmatprep.subr.mxu0 0.0
      %690 = vmatpush1.msra.mxu0 0.0
      %691 = vmatprep.subr.mxu0 0.0
      %692 = vmatpush1.msra.mxu0 0.0
      %693 = vmatprep.subr.mxu0 0.0
      %694 = vmatpush1.msra.mxu0 0.0
      %695 = vmatprep.subr.mxu0 0.0
      %696 = vmatpush1.msra.mxu0 0.0
      %697 = vmatprep.subr.mxu0 0.0
      %698 = vmatpush1.msra.mxu0 0.0
      %699 = vmatprep.subr.mxu0 0.0
      %700 = vmatpush1.msra.mxu0 0.0
      %701 = vmatprep.subr.mxu0 0.0
      %702 = vmatpush1.msra.mxu0 0.0
      %703 = vmatprep.subr.mxu0 0.0
      %704 = vmatpush1.msra.mxu0 0.0
      %705 = vmatprep.subr.mxu0 0.0
      %706 = vmatpush1.msra.mxu0 0.0
      %707 = vmatprep.subr.mxu0 0.0
      %708 = vmatpush1.msra.mxu0 0.0
      %709 = vmatprep.subr.mxu0 0.0
      %710 = vmatpush1.msra.mxu0 0.0
      %711 = vmatprep.subr.mxu0 0.0
      %712 = vmatpush1.msra.mxu0 0.0
      %713 = vmatprep.subr.mxu0 0.0
      %714 = vmatpush1.msra.mxu0 0.0
      %715 = vmatprep.subr.mxu0 0.0
      %716 = vmatpush1.msra.mxu0 0.0
      %717 = vmatprep.subr.mxu0 0.0
      %718 = vmatpush1.msra.mxu0 0.0
      %719 = vmatprep.mubr.f32.mxu0 0.0
      %720 = vmatmul.mubr.f32.gmra.mrb[0].mxu0 %v515
      %v721 = vpop.f32.mrb[0].mxu0
      %v722 = vadd.f32 %v498, %v721
      %v723 = vpop.f32.mrb[0].mxu0
      %724 = vmatprep.mubr.f32.mxu0 0.0
      %725 = vmatmul.mubr.f32.gmra.mrb[0].mxu0 %v516
      %v726 = vpop.f32.mrb[0].mxu0
      %v727 = vadd.f32 %v498, %v726
      %v728 = vpop.f32.mrb[0].mxu0
      %729 = vdwg.mxu0
      %v730 = vadd.f32 %v524, %v645
      %v731 = vadd.f32 %v527, %v651
      %v732 = vxor.u32 %v730, 2147483648
      %v733 = vxor.u32 %v731, 2147483648
      %v734 = vmul.f32 %v732, 1.442695
      %v735 = vpow.pop %v734
      %v736 = vmul.f32 %v733, 1.442695
      %v737 = vpow.pop %v736
      %v738 = vadd.f32 %v735, 1.0
      %v739 = vadd.f32 %v737, 1.0
      %v740 = vrcp.pop %v738
      %v741 = vmul.f32 1.0, %v740
      %v742 = vrcp.pop %v739
      %v743 = vmul.f32 1.0, %v742
      %v744 = vadd.f32 %v525, %v647
      %v745 = vadd.f32 %v528, %v653
      %v746 = vxor.u32 %v744, 2147483648
      %v747 = vxor.u32 %v745, 2147483648
      %v748 = vmul.f32 %v746, 1.442695
      %v749 = vpow.pop %v748
      %v750 = vmul.f32 %v747, 1.442695
      %v751 = vpow.pop %v750
      %v752 = vadd.f32 %v749, 1.0
      %v753 = vadd.f32 %v751, 1.0
      %v754 = vrcp.pop %v752
      %v755 = vmul.f32 1.0, %v754
      %v756 = vrcp.pop %v753
      %v757 = vmul.f32 1.0, %v756
      %v758 = vmul.f32 %v741, %v722
      %v759 = vmul.f32 %v743, %v727
      %v760 = vadd.f32 %v526, %v758
      %v761 = vadd.f32 %v529, %v759
      %v762 = vtanh.pop %v760
      %v763 = vtanh.pop %v761
      %v764 = vsub.f32 1.0, %v755
      %v765 = vsub.f32 1.0, %v757
      %v766 = vmul.f32 %v764, %v762
      %v767 = vmul.f32 %v765, %v763
      %v768 = vmul.f32 %v755, %v515
      %v769 = vmul.f32 %v757, %v516
      %v770 = vadd.f32 %v766, %v768
      %v771 = vadd.f32 %v767, %v769
      %s772 = sadd.s32 %s502, %s510
      %p773 = scmp.lt.s32.totalorder %s772, 8
      %v774 = vmax.f32 %v517, %v770
      %v775 = vmax.f32 %v518, %v771
      %s776 = scalar_select %p773, 1, 0
      %v777 = vstv %s776
      %vm778 = vcmp.eq.s32.totalorder %v777, 1
      %v779 = vsel %vm778, %v774, %v517
      %v780 = vsel %vm778, %v775, %v518
      %v781 = vadd.f32 %v519, %v770
      %v782 = vadd.f32 %v520, %v771
      %v783 = vsel %vm778, %v781, %v519
      %v784 = vsel %vm778, %v782, %v520
    $region62: #{tpu_custom_call.1} parent=1 // loop_footer
      %s514 = sadd.s32 1, %s510
    $region63: #{tpu_custom_call.1} parent=1 // loop_footer_branch
      %509 = sbr.rel target = $region59
    $region64: #{tpu_custom_call.1} parent=1 // loop_exit
      _
    %785 = vst [vmem:[#allocation3] sm:$0xff] %v515
    %786 = vst [vmem:[#allocation3 + $0x8] sm:$0xff] %v516
    %787 = vst [vmem:[#allocation4] sm:$0xff] %v517
    %788 = vst [vmem:[#allocation4 + $0x8] sm:$0xff] %v518
    %789 = vst [vmem:[#allocation5] sm:$0xff] %v519
    %790 = vst [vmem:[#allocation5 + $0x8] sm:$0xff] %v520
    // Predicated region
    $region65: #{tpu_custom_call.1} parent=1 // pred_check
      %p791 = pneg %p99
    $region66: #{tpu_custom_call.1} parent=1 // pred_check_branch
      %793 = sbr.rel (%p791) target = $region68
    $region67: #{tpu_custom_call.1} parent=1 // pred_region
      %v794 = vmul.f32 %v519, 0.125
      %v795 = vmul.f32 %v520, 0.125
      %v796 = vld [vmem:[#allocation12] sm:$0xff]
      %v797 = vld [vmem:[#allocation12 + $0x8] sm:$0xff]
      %v798 = vld [vmem:[#allocation12 + $0x10] sm:$0xff]
      %v799 = vld [vmem:[#allocation12 + $0x18] sm:$0xff]
      %v800 = vld [vmem:[#allocation12 + $0x20] sm:$0xff]
      %v801 = vld [vmem:[#allocation12 + $0x28] sm:$0xff]
      %v802 = vld [vmem:[#allocation12 + $0x30] sm:$0xff]
      %v803 = vld [vmem:[#allocation12 + $0x38] sm:$0xff]
      %v804 = vld [vmem:[#allocation12 + $0x40] sm:$0xff]
      %v805 = vld [vmem:[#allocation12 + $0x48] sm:$0xff]
      %v806 = vld [vmem:[#allocation12 + $0x50] sm:$0xff]
      %v807 = vld [vmem:[#allocation12 + $0x58] sm:$0xff]
      %v808 = vld [vmem:[#allocation12 + $0x60] sm:$0xff]
      %v809 = vld [vmem:[#allocation12 + $0x68] sm:$0xff]
      %v810 = vld [vmem:[#allocation12 + $0x70] sm:$0xff]
      %v811 = vld [vmem:[#allocation12 + $0x78] sm:$0xff]
      %v812 = vld [vmem:[#allocation14] sm:$0xff]
      %v813 = vld [vmem:[#allocation14 + $0x8] sm:$0xff]
      %v814 = vld [vmem:[#allocation14 + $0x10] sm:$0xff]
      %v815 = vld [vmem:[#allocation14 + $0x18] sm:$0xff]
      %v816 = vld [vmem:[#allocation14 + $0x20] sm:$0xff]
      %v817 = vld [vmem:[#allocation14 + $0x28] sm:$0xff]
      %v818 = vld [vmem:[#allocation14 + $0x30] sm:$0xff]
      %v819 = vld [vmem:[#allocation14 + $0x38] sm:$0xff]
      %v820 = vld [vmem:[#allocation14 + $0x40] sm:$0xff]
      %v821 = vld [vmem:[#allocation14 + $0x48] sm:$0xff]
      %v822 = vld [vmem:[#allocation14 + $0x50] sm:$0xff]
      %v823 = vld [vmem:[#allocation14 + $0x58] sm:$0xff]
      %v824 = vld [vmem:[#allocation14 + $0x60] sm:$0xff]
      %v825 = vld [vmem:[#allocation14 + $0x68] sm:$0xff]
      %v826 = vld [vmem:[#allocation14 + $0x70] sm:$0xff]
      %v827 = vld [vmem:[#allocation14 + $0x78] sm:$0xff]
      %828 = vmatprep.subr.mxu0 0.0
      %829 = vmatpush1.msra.mxu0 %v812
      %830 = vmatprep.subr.mxu0 0.0
      %831 = vmatpush1.msra.mxu0 %v813
      %832 = vmatprep.subr.mxu0 0.0
      %833 = vmatpush1.msra.mxu0 %v814
      %834 = vmatprep.subr.mxu0 0.0
      %835 = vmatpush1.msra.mxu0 %v815
      %836 = vmatprep.subr.mxu0 0.0
      %837 = vmatpush1.msra.mxu0 %v816
      %838 = vmatprep.subr.mxu0 0.0
      %839 = vmatpush1.msra.mxu0 %v817
      %840 = vmatprep.subr.mxu0 0.0
      %841 = vmatpush1.msra.mxu0 %v818
      %842 = vmatprep.subr.mxu0 0.0
      %843 = vmatpush1.msra.mxu0 %v819
      %844 = vmatprep.subr.mxu0 0.0
      %845 = vmatpush1.msra.mxu0 %v820
      %846 = vmatprep.subr.mxu0 0.0
      %847 = vmatpush1.msra.mxu0 %v821
      %848 = vmatprep.subr.mxu0 0.0
      %849 = vmatpush1.msra.mxu0 %v822
      %850 = vmatprep.subr.mxu0 0.0
      %851 = vmatpush1.msra.mxu0 %v823
      %852 = vmatprep.subr.mxu0 0.0
      %853 = vmatpush1.msra.mxu0 %v824
      %854 = vmatprep.subr.mxu0 0.0
      %855 = vmatpush1.msra.mxu0 %v825
      %856 = vmatprep.subr.mxu0 0.0
      %857 = vmatpush1.msra.mxu0 %v826
      %858 = vmatprep.subr.mxu0 0.0
      %859 = vmatpush1.msra.mxu0 %v827
      %860 = vmatprep.subr.mxu0 0.0
      %861 = vmatpush1.msra.mxu0 0.0
      %862 = vmatprep.subr.mxu0 0.0
      %863 = vmatpush1.msra.mxu0 0.0
      %864 = vmatprep.subr.mxu0 0.0
      %865 = vmatpush1.msra.mxu0 0.0
      %866 = vmatprep.subr.mxu0 0.0
      %867 = vmatpush1.msra.mxu0 0.0
      %868 = vmatprep.subr.mxu0 0.0
      %869 = vmatpush1.msra.mxu0 0.0
      %870 = vmatprep.subr.mxu0 0.0
      %871 = vmatpush1.msra.mxu0 0.0
      %872 = vmatprep.subr.mxu0 0.0
      %873 = vmatpush1.msra.mxu0 0.0
      %874 = vmatprep.subr.mxu0 0.0
      %875 = vmatpush1.msra.mxu0 0.0
      %876 = vmatprep.subr.mxu0 0.0
      %877 = vmatpush1.msra.mxu0 0.0
      %878 = vmatprep.subr.mxu0 0.0
      %879 = vmatpush1.msra.mxu0 0.0
      %880 = vmatprep.subr.mxu0 0.0
      %881 = vmatpush1.msra.mxu0 0.0
      %882 = vmatprep.subr.mxu0 0.0
      %883 = vmatpush1.msra.mxu0 0.0
      %884 = vmatprep.subr.mxu0 0.0
      %885 = vmatpush1.msra.mxu0 0.0
      %886 = vmatprep.subr.mxu0 0.0
      %887 = vmatpush1.msra.mxu0 0.0
      %888 = vmatprep.subr.mxu0 0.0
      %889 = vmatpush1.msra.mxu0 0.0
      %890 = vmatprep.subr.mxu0 0.0
      %891 = vmatpush1.msra.mxu0 0.0
      %892 = vmatprep.mubr.f32.mxu0 0.0
      %893 = vmatmul.mubr.f32.gmra.mrb[0].mxu0 %v794
      %v894 = vpop.f32.mrb[0].mxu0
      %v895 = vadd.f32 0.0, %v894
      %v896 = vpop.f32.mrb[0].mxu0
      %897 = vmatprep.mubr.f32.mxu0 0.0
      %898 = vmatmul.mubr.f32.gmra.mrb[0].mxu0 %v795
      %v899 = vpop.f32.mrb[0].mxu0
      %v900 = vadd.f32 0.0, %v899
      %v901 = vpop.f32.mrb[0].mxu0
      %902 = vdwg.mxu0
      %903 = vmatprep.subr.mxu0 0.0
      %904 = vmatpush1.msra.mxu0 %v796
      %905 = vmatprep.subr.mxu0 0.0
      %906 = vmatpush1.msra.mxu0 %v797
      %907 = vmatprep.subr.mxu0 0.0
      %908 = vmatpush1.msra.mxu0 %v798
      %909 = vmatprep.subr.mxu0 0.0
      %910 = vmatpush1.msra.mxu0 %v799
      %911 = vmatprep.subr.mxu0 0.0
      %912 = vmatpush1.msra.mxu0 %v800
      %913 = vmatprep.subr.mxu0 0.0
      %914 = vmatpush1.msra.mxu0 %v801
      %915 = vmatprep.subr.mxu0 0.0
      %916 = vmatpush1.msra.mxu0 %v802
      %917 = vmatprep.subr.mxu0 0.0
      %918 = vmatpush1.msra.mxu0 %v803
      %919 = vmatprep.subr.mxu0 0.0
      %920 = vmatpush1.msra.mxu0 %v804
      %921 = vmatprep.subr.mxu0 0.0
      %922 = vmatpush1.msra.mxu0 %v805
      %923 = vmatprep.subr.mxu0 0.0
      %924 = vmatpush1.msra.mxu0 %v806
      %925 = vmatprep.subr.mxu0 0.0
      %926 = vmatpush1.msra.mxu0 %v807
      %927 = vmatprep.subr.mxu0 0.0
      %928 = vmatpush1.msra.mxu0 %v808
      %929 = vmatprep.subr.mxu0 0.0
      %930 = vmatpush1.msra.mxu0 %v809
      %931 = vmatprep.subr.mxu0 0.0
      %932 = vmatpush1.msra.mxu0 %v810
      %933 = vmatprep.subr.mxu0 0.0
      %934 = vmatpush1.msra.mxu0 %v811
      %935 = vmatprep.subr.mxu0 0.0
      %936 = vmatpush1.msra.mxu0 0.0
      %937 = vmatprep.subr.mxu0 0.0
      %938 = vmatpush1.msra.mxu0 0.0
      %939 = vmatprep.subr.mxu0 0.0
      %940 = vmatpush1.msra.mxu0 0.0
      %941 = vmatprep.subr.mxu0 0.0
      %942 = vmatpush1.msra.mxu0 0.0
      %943 = vmatprep.subr.mxu0 0.0
      %944 = vmatpush1.msra.mxu0 0.0
      %945 = vmatprep.subr.mxu0 0.0
      %946 = vmatpush1.msra.mxu0 0.0
      %947 = vmatprep.subr.mxu0 0.0
      %948 = vmatpush1.msra.mxu0 0.0
      %949 = vmatprep.subr.mxu0 0.0
      %950 = vmatpush1.msra.mxu0 0.0
      %951 = vmatprep.subr.mxu0 0.0
      %952 = vmatpush1.msra.mxu0 0.0
      %953 = vmatprep.subr.mxu0 0.0
      %954 = vmatpush1.msra.mxu0 0.0
      %955 = vmatprep.subr.mxu0 0.0
      %956 = vmatpush1.msra.mxu0 0.0
      %957 = vmatprep.subr.mxu0 0.0
      %958 = vmatpush1.msra.mxu0 0.0
      %959 = vmatprep.subr.mxu0 0.0
      %960 = vmatpush1.msra.mxu0 0.0
      %961 = vmatprep.subr.mxu0 0.0
      %962 = vmatpush1.msra.mxu0 0.0
      %963 = vmatprep.subr.mxu0 0.0
      %964 = vmatpush1.msra.mxu0 0.0
      %965 = vmatprep.subr.mxu0 0.0
      %966 = vmatpush1.msra.mxu0 0.0
      %967 = vmatprep.mubr.f32.mxu0 0.0
      %968 = vmatmul.mubr.f32.gmra.mrb[0].mxu0 %v517
      %v969 = vpop.f32.mrb[0].mxu0
      %v970 = vadd.f32 %v895, %v969
      %v971 = vpop.f32.mrb[0].mxu0
      %972 = vmatprep.mubr.f32.mxu0 0.0
      %973 = vmatmul.mubr.f32.gmra.mrb[0].mxu0 %v518
      %v974 = vpop.f32.mrb[0].mxu0
      %v975 = vadd.f32 %v900, %v974
      %v976 = vpop.f32.mrb[0].mxu0
      %977 = vdwg.mxu0
      %v978 = vld [vmem:[%s7] sm:$0x1]
      %v980 = vlaneseq
      %v981 = vshrl.u32 %v980, 7
      %v982 = vsub.s32 0, %v981
      %v983 = vrot.slane %v978, %v982
      %v985 = vadd.f32 %v970, %v983
      %v986 = vadd.f32 %v975, %v983
      %987 = vst [vmem:[#allocation15] sm:$0xff] %v985
      %988 = vst [vmem:[#allocation15 + $0x8] sm:$0xff] %v986
    $region68: #{tpu_custom_call.1} parent=1 // pred_fallthru
      _
    // Predicated region
    $region69: #{tpu_custom_call.1} parent=1 // pred_check
      _
    $region70: #{tpu_custom_call.1} parent=1 // pred_check_branch
      %990 = sbr.rel (0) target = $region72
    $region71: #{tpu_custom_call.1} parent=1 // pred_region
      %s992 = ssub.s32 256, 256
      %993 = vsyncadd [#allocation8], %s992
      %s994 = sshll.u32 [#allocation15], 4
      %s995 = int_to_ptr.vmem [resolvable:$true] %s994
      %1000 = dma.vmem_to_hbm [thread:$0]  %s995, 256, %s8, [#allocation8], 128, 128, 8
    $region72: #{tpu_custom_call.1} parent=1 // pred_fallthru
      _
    // Predicated region
    $region73: #{tpu_custom_call.1} parent=1 // pred_check
      _
    $region74: #{tpu_custom_call.1} parent=1 // pred_check_branch
      %1002 = sbr.rel (0) target = $region76
    $region75: #{tpu_custom_call.1} parent=1 // pred_region
      %1003 = dma.done [#allocation8], 256
    $region76: #{tpu_custom_call.1} parent=1 // pred_fallthru
      _
    %1004 = vsyncpa [#allocation7], 1
    %1005 = vsyncpa [#allocation10], 1
    %1006 = vsyncpa [#allocation13], 1
    %1007 = vsyncpa [#allocation8], 1

</llo_original>
